<compile_context>
chip_gen: v6e
topology: v6e:2x2x1
jax: 0.10.0
libtpu: 0.0.40
codegen_flags: <defaults>
</compile_context>

<pallas_src>
import jax
import jax.numpy as jnp
from jax.experimental import pallas as pl
from jax.experimental.pallas import tpu as pltpu

# ---- static module configuration (matches Mixed2.__init__ defaults) --------
INP_SIZE = 128        # inp_size  (lane-friendly)
OUTP_SIZE = 64        # outp_size
OUT_PAD = 128         # lane-dense padded output width (sliced back to 64)
HIDDEN_LAYERS = 2     # hidden_layers
ROTATIONS = 3         # rotations
DIAG_M = 0.01         # diagonal_M
BATCH = 256           # batch size for the demo input
TILE_B = 128          # batch tile per grid step (fills MXU M dimension)

NUM_ROT_LAYERS = HIDDEN_LAYERS * 2 * ROTATIONS


# -----------------------------------------------------------------------------
# Pallas kernel: one batch tile.  Features are in de-interleaved layout
# (lane i < 64 holds even feature 2i, lane i+64 holds odd feature 2i+1), so a
# single half-width roll yields every lane's rotation partner.  Each hidden
# layer is:   x = relu( A*x + B*roll(x, 64) + bias )   where A/B encode the
# fused  R(phiB) @ Diag @ R(phiA)  per-pair 2x2 map (precomputed host-side).
# -----------------------------------------------------------------------------
def mixed2_kernel(x_ref, acoef_ref, bcoef_ref, bias_ref, wT_ref, ob_ref, o_ref):
    half = x_ref.shape[1] // 2

    x = x_ref[...]                    # (TILE_B, D) f32, de-interleaved layout
    a_all = acoef_ref[...]            # (H, D) per-lane "self" coefficient
    b_all = bcoef_ref[...]            # (H, D) per-lane "partner" coefficient
    bias_all = bias_ref[...]          # (H, D) biases (de-interleaved)

    for h in range(HIDDEN_LAYERS):
        partner = pltpu.roll(x, half, axis=1)          # lane i <-> lane i+64 (XLU)
        x = jnp.maximum(
            a_all[h:h + 1] * x + b_all[h:h + 1] * partner + bias_all[h:h + 1],
            0.0)                                        # fused rot/diag/rot + Bias + ReLU

    # Final Linear: y = x @ W.T + b  (rows of W.T permuted to match layout,
    # columns zero-padded to 128 lanes -> unmasked, lane-dense store).
    o_ref[...] = (jnp.dot(x, wT_ref[...], preferred_element_type=jnp.float32)
                  + ob_ref[...])


def mixed2_forward(x_dl, a_dl, b_dl, bias_dl, wT_pad, ob_pad):
    """x_dl and all params are already in the de-interleaved / fused layout."""
    batch, d_dim = x_dl.shape
    n_hid = a_dl.shape[0]
    out_pad = wT_pad.shape[1]
    assert batch % TILE_B == 0

    const_spec = lambda shape: pl.BlockSpec(shape, lambda i: (0, 0))

    y_pad = pl.pallas_call(
        mixed2_kernel,
        out_shape=jax.ShapeDtypeStruct((batch, out_pad), jnp.float32),
        grid=(batch // TILE_B,),
        in_specs=[
            pl.BlockSpec((TILE_B, d_dim), lambda i: (i, 0)),   # x batch tile
            const_spec((n_hid, d_dim)),                        # A coefficients
            const_spec((n_hid, d_dim)),                        # B coefficients
            const_spec((n_hid, d_dim)),                        # biases
            const_spec((d_dim, out_pad)),                      # W.T (padded)
            const_spec((1, out_pad)),                          # b   (padded)
        ],
        out_specs=pl.BlockSpec((TILE_B, out_pad), lambda i: (i, 0)),
        compiler_params=pltpu.CompilerParams(
            dimension_semantics=("parallel",)),                # v7x: 2 TCs
    )(x_dl, a_dl, b_dl, bias_dl, wT_pad, ob_pad)

    return y_pad[:, :OUTP_SIZE]


# -----------------------------------------------------------------------------
# Pure-JAX reference (mirrors the PyTorch forward, fully sequential layers,
# original interleaved feature layout — validates the host-side fusion).
# -----------------------------------------------------------------------------
def _rot_pair_ref(x, theta):
    c, s = jnp.cos(theta), jnp.sin(theta)
    xe, xo = x[:, 0::2], x[:, 1::2]
    ye = c * xe - s * xo
    yo = s * xe + c * xo
    return jnp.stack([ye, yo], axis=-1).reshape(x.shape)


def mixed2_ref(x, thetas, diag_eff, bias, W, b):
    r = 0
    for h in range(HIDDEN_LAYERS):
        for _ in range(ROTATIONS):
            x = _rot_pair_ref(x, thetas[r]); r += 1
        x = x * diag_eff[h:h + 1]
        for _ in range(ROTATIONS):
            x = _rot_pair_ref(x, thetas[r]); r += 1
        x = x + bias[h:h + 1]
        x = jnp.maximum(x, 0.0)
    y = jnp.matmul(x, W.T, precision=jax.lax.Precision.HIGHEST)
    return y + b[0]


# -----------------------------------------------------------------------------
if __name__ == "__main__":
    key = jax.random.PRNGKey(0)
    k_x, k_th, k_d, k_b, k_w, k_wb = jax.random.split(key, 6)

    # Input
    x = jax.random.normal(k_x, (BATCH, INP_SIZE), jnp.float32)

    # Rotational parameters: one angle per adjacent feature pair, per rotation layer.
    thetas = 0.5 * jax.random.normal(
        k_th, (NUM_ROT_LAYERS, INP_SIZE // 2), jnp.float32)

    # Diagonal parameters: effective diagonal = 1 + M * tanh(raw)
    d_raw = jax.random.normal(k_d, (HIDDEN_LAYERS, INP_SIZE), jnp.float32)
    diag_eff = 1.0 + DIAG_M * jnp.tanh(d_raw)                 # (H, D)

    # Bias parameters
    bias = 0.1 * jax.random.normal(k_b, (HIDDEN_LAYERS, INP_SIZE), jnp.float32)

    # Final Linear(inp_size, outp_size): W (OUT, D), b (1, OUT)
    W = jax.random.normal(k_w, (OUTP_SIZE, INP_SIZE), jnp.float32) / jnp.sqrt(INP_SIZE)
    b = 0.1 * jax.random.normal(k_wb, (1, OUTP_SIZE), jnp.float32)

    # ---- host-side de-interleave / fuse / pad (exact algebra, done once) ----
    perm = jnp.concatenate([jnp.arange(0, INP_SIZE, 2),       # even features
                            jnp.arange(1, INP_SIZE, 2)])      # odd features

    a_rows, b_rows = [], []
    for h in range(HIDDEN_LAYERS):
        base = h * 2 * ROTATIONS
        # consecutive Givens rotations on the same pairs compose: angles add
        phiA = thetas[base:base + ROTATIONS].sum(axis=0)              # (D/2,)
        phiB = thetas[base + ROTATIONS:base + 2 * ROTATIONS].sum(axis=0)
        cA, sA = jnp.cos(phiA), jnp.sin(phiA)
        cB, sB = jnp.cos(phiB), jnp.sin(phiB)
        de = diag_eff[h, 0::2]                                        # even-lane diag
        do = diag_eff[h, 1::2]                                        # odd-lane diag
        # M = R(phiB) @ diag(de, do) @ R(phiA)  (per adjacent pair)
        m00 = cB * de * cA - sB * do * sA
        m01 = -cB * de * sA - sB * do * cA
        m10 = sB * de * cA + cB * do * sA
        m11 = -sB * de * sA + cB * do * cA
        # de-interleaved layout:  y = A*x + B*roll(x, D/2)
        a_rows.append(jnp.concatenate([m00, m11]))                    # (D,)
        b_rows.append(jnp.concatenate([m01, m10]))                    # (D,)
    a_dl = jnp.stack(a_rows)                                          # (H, D)
    b_dl = jnp.stack(b_rows)                                          # (H, D)

    x_dl = x[:, perm]                                                 # (B, D)
    bias_dl = bias[:, perm]                                           # (H, D)
    wT_dl = W.T[perm, :]                                              # (D, OUT)
    wT_pad = jnp.zeros((INP_SIZE, OUT_PAD), jnp.float32).at[:, :OUTP_SIZE].set(wT_dl)
    ob_pad = jnp.zeros((1, OUT_PAD), jnp.float32).at[:, :OUTP_SIZE].set(b)

    out = mixed2_forward(x_dl, a_dl, b_dl, bias_dl, wT_pad, ob_pad)
    out = jax.block_until_ready(out)

    ref = mixed2_ref(x, thetas, diag_eff, bias, W, b)
    assert out.shape == (BATCH, OUTP_SIZE)
    assert jnp.allclose(out, ref, rtol=1e-4, atol=1e-4), "mismatch vs JAX reference"

    print("KERNEL_OK")
</pallas_src>

<mosaic_0001>
module attributes {stable_mosaic.version = 11 : i64} {
  func.func @mixed2_kernel(%arg0: i32, %arg1: memref<128x128xf32, #tpu.memory_space<vmem>>, %arg2: memref<2x128xf32, #tpu.memory_space<vmem>>, %arg3: memref<2x128xf32, #tpu.memory_space<vmem>>, %arg4: memref<2x128xf32, #tpu.memory_space<vmem>>, %arg5: memref<128x128xf32, #tpu.memory_space<vmem>>, %arg6: memref<1x128xf32, #tpu.memory_space<vmem>>, %arg7: memref<128x128xf32, #tpu.memory_space<vmem>>) attributes {dimension_semantics = [#tpu.dimension_semantics<parallel>], iteration_bounds = array<i64: 2>, scalar_prefetch = 0 : i64, scratch_operands = 0 : i64, tpu.core_type = #tpu.core_type<tc>, window_params = [{transform_indices = @transform_0, window_bounds = array<i64: 128, 128>}, {pipeline_mode = #tpu.pipeline_mode<synchronous>, transform_indices = @transform_1, window_bounds = array<i64: 2, 128>}, {pipeline_mode = #tpu.pipeline_mode<synchronous>, transform_indices = @transform_2, window_bounds = array<i64: 2, 128>}, {pipeline_mode = #tpu.pipeline_mode<synchronous>, transform_indices = @transform_3, window_bounds = array<i64: 2, 128>}, {pipeline_mode = #tpu.pipeline_mode<synchronous>, transform_indices = @transform_4, window_bounds = array<i64: 128, 128>}, {pipeline_mode = #tpu.pipeline_mode<synchronous>, transform_indices = @transform_5, window_bounds = array<i64: 1, 128>}, {transform_indices = @transform_6, window_bounds = array<i64: 128, 128>}]} {
    %c0 = arith.constant 0 : index
    %c0_0 = arith.constant 0 : index
    %0 = vector.load %arg1[%c0, %c0_0] : memref<128x128xf32, #tpu.memory_space<vmem>>, vector<128x128xf32>
    %c0_1 = arith.constant 0 : index
    %c0_2 = arith.constant 0 : index
    %1 = vector.load %arg2[%c0_1, %c0_2] : memref<2x128xf32, #tpu.memory_space<vmem>>, vector<2x128xf32>
    %c0_3 = arith.constant 0 : index
    %c0_4 = arith.constant 0 : index
    %2 = vector.load %arg3[%c0_3, %c0_4] : memref<2x128xf32, #tpu.memory_space<vmem>>, vector<2x128xf32>
    %c0_5 = arith.constant 0 : index
    %c0_6 = arith.constant 0 : index
    %3 = vector.load %arg4[%c0_5, %c0_6] : memref<2x128xf32, #tpu.memory_space<vmem>>, vector<2x128xf32>
    %c64_i32 = arith.constant 64 : i32
    %4 = tpu.dynamic_rotate %0 by %c64_i32 dim 1 : vector<128x128xf32>, i32 -> vector<128x128xf32>
    %5 = vector.extract_strided_slice %1 {offsets = [0, 0], sizes = [1, 128], strides = [1, 1]} : vector<2x128xf32> to vector<1x128xf32>
    %6 = vector.broadcast %5 : vector<1x128xf32> to vector<128x128xf32>
    %7 = arith.mulf %6, %0 : vector<128x128xf32>
    %8 = vector.extract_strided_slice %2 {offsets = [0, 0], sizes = [1, 128], strides = [1, 1]} : vector<2x128xf32> to vector<1x128xf32>
    %9 = vector.broadcast %8 : vector<1x128xf32> to vector<128x128xf32>
    %10 = arith.mulf %9, %4 : vector<128x128xf32>
    %11 = arith.addf %7, %10 : vector<128x128xf32>
    %12 = vector.extract_strided_slice %3 {offsets = [0, 0], sizes = [1, 128], strides = [1, 1]} : vector<2x128xf32> to vector<1x128xf32>
    %13 = vector.broadcast %12 : vector<1x128xf32> to vector<128x128xf32>
    %14 = arith.addf %11, %13 : vector<128x128xf32>
    %cst = arith.constant 0.000000e+00 : f32
    %15 = vector.broadcast %cst : f32 to vector<128x128xf32>
    %16 = arith.maximumf %14, %15 : vector<128x128xf32>
    %c64_i32_7 = arith.constant 64 : i32
    %17 = tpu.dynamic_rotate %16 by %c64_i32_7 dim 1 : vector<128x128xf32>, i32 -> vector<128x128xf32>
    %18 = vector.extract_strided_slice %1 {offsets = [1, 0], sizes = [1, 128], strides = [1, 1]} : vector<2x128xf32> to vector<1x128xf32>
    %19 = vector.broadcast %18 : vector<1x128xf32> to vector<128x128xf32>
    %20 = arith.mulf %19, %16 : vector<128x128xf32>
    %21 = vector.extract_strided_slice %2 {offsets = [1, 0], sizes = [1, 128], strides = [1, 1]} : vector<2x128xf32> to vector<1x128xf32>
    %22 = vector.broadcast %21 : vector<1x128xf32> to vector<128x128xf32>
    %23 = arith.mulf %22, %17 : vector<128x128xf32>
    %24 = arith.addf %20, %23 : vector<128x128xf32>
    %25 = vector.extract_strided_slice %3 {offsets = [1, 0], sizes = [1, 128], strides = [1, 1]} : vector<2x128xf32> to vector<1x128xf32>
    %26 = vector.broadcast %25 : vector<1x128xf32> to vector<128x128xf32>
    %27 = arith.addf %24, %26 : vector<128x128xf32>
    %cst_8 = arith.constant 0.000000e+00 : f32
    %28 = vector.broadcast %cst_8 : f32 to vector<128x128xf32>
    %29 = arith.maximumf %27, %28 : vector<128x128xf32>
    %c0_9 = arith.constant 0 : index
    %c0_10 = arith.constant 0 : index
    %30 = vector.load %arg5[%c0_9, %c0_10] : memref<128x128xf32, #tpu.memory_space<vmem>>, vector<128x128xf32>
    %cst_11 = arith.constant dense<0.000000e+00> : vector<128x128xf32>
    %31 = tpu.matmul %29, %30, %cst_11 {dimension_numbers = #tpu.dot_dimension_numbers<[1], [0], [0], [1], [0, 0, 1, 1], [], []>} : vector<128x128xf32>, vector<128x128xf32>, vector<128x128xf32> -> vector<128x128xf32>
    %c0_12 = arith.constant 0 : index
    %c0_13 = arith.constant 0 : index
    %32 = vector.load %arg6[%c0_12, %c0_13] : memref<1x128xf32, #tpu.memory_space<vmem>>, vector<1x128xf32>
    %33 = vector.broadcast %32 : vector<1x128xf32> to vector<128x128xf32>
    %34 = arith.addf %31, %33 : vector<128x128xf32>
    %c0_14 = arith.constant 0 : index
    %c0_15 = arith.constant 0 : index
    %35 = vector.load %arg7[%c0_14, %c0_15] : memref<128x128xf32, #tpu.memory_space<vmem>>, vector<128x128xf32>
    tpu.vector_store %arg7[%c0_14, %c0_15], %34 {strides = array<i32>} : memref<128x128xf32, #tpu.memory_space<vmem>>, vector<128x128xf32>,
    return
  }
  func.func @transform_0(%arg0: i32) -> (i32, i32) {
    %c0_i32 = arith.constant 0 : i32
    %c0_i32_0 = arith.constant 0 : i32
    return %arg0, %c0_i32 : i32, i32
  }
  func.func @transform_1(%arg0: i32) -> (i32, i32) {
    %c0_i32 = arith.constant 0 : i32
    %c0_i32_0 = arith.constant 0 : i32
    %c0_i32_1 = arith.constant 0 : i32
    return %c0_i32, %c0_i32_0 : i32, i32
  }
  func.func @transform_2(%arg0: i32) -> (i32, i32) {
    %c0_i32 = arith.constant 0 : i32
    %c0_i32_0 = arith.constant 0 : i32
    %c0_i32_1 = arith.constant 0 : i32
    return %c0_i32, %c0_i32_0 : i32, i32
  }
  func.func @transform_3(%arg0: i32) -> (i32, i32) {
    %c0_i32 = arith.constant 0 : i32
    %c0_i32_0 = arith.constant 0 : i32
    %c0_i32_1 = arith.constant 0 : i32
    return %c0_i32, %c0_i32_0 : i32, i32
  }
  func.func @transform_4(%arg0: i32) -> (i32, i32) {
    %c0_i32 = arith.constant 0 : i32
    %c0_i32_0 = arith.constant 0 : i32
    %c0_i32_1 = arith.constant 0 : i32
    return %c0_i32, %c0_i32_0 : i32, i32
  }
  func.func @transform_5(%arg0: i32) -> (i32, i32) {
    %c0_i32 = arith.constant 0 : i32
    %c0_i32_0 = arith.constant 0 : i32
    %c0_i32_1 = arith.constant 0 : i32
    return %c0_i32, %c0_i32_0 : i32, i32
  }
  func.func @transform_6(%arg0: i32) -> (i32, i32) {
    %c0_i32 = arith.constant 0 : i32
    %c0_i32_0 = arith.constant 0 : i32
    return %arg0, %c0_i32 : i32, i32
  }
}

</mosaic_0001>

<llo_original>
// kernel: tpu_custom_call.1
$region0: #{tpu_custom_call.1}
  #allocation0 [shape = 'u32[]', space=smem, size = 0x4, offset = 0x4, fixed_abs, tag = 'smem constant byte address 0x4 - core index']
  #allocation1 [shape = 'u32[144,128]{1,0:T(1,128)}', space=vmem, size = 0x12000, scoped, tag = 'internal scratch']
  %s0 = inlined_call_operand.hbm [shape: f32[256,128], index: 0, kind: input, shape index: {}]
  %s1 = inlined_call_operand.hbm [shape: f32[2,128], index: 1, kind: input, shape index: {}]
  %s2 = inlined_call_operand.vmem [shape: f32[2,128], index: 2, kind: input, shape index: {}]
  %s3 = inlined_call_operand.vmem [shape: f32[2,128], index: 3, kind: input, shape index: {}]
  %s4 = inlined_call_operand.hbm [shape: f32[128,128], index: 4, kind: input, shape index: {}]
  %s5 = inlined_call_operand.vmem [shape: f32[1,128], index: 5, kind: input, shape index: {}]
  %s6 = inlined_call_operand.hbm [shape: f32[256,128], index: 6, kind: output, shape index: {}]
  %s7 = sld [smem:[#allocation0]]
  $region69: #{tpu_custom_call.1} parent=0
    _
  %s9 = ssub.s32 1, %s7
  %s10 = scalar_select 0, %s9, %s7
  $region1: #{tpu_custom_call.1} parent=0
    #allocation2 [shape = 'u8[131072]{0}', space=vmem, size = 0x20000, scoped, tag = 'input window, operand 0']
    #allocation3 [shape = 's32[2]{0}', space=sflag, size = 0x8, scoped, tag = 'scoped memory for tpu_custom_call.1']
    #allocation4 [shape = 's32[2]{0}', space=sflag, size = 0x8, scoped, tag = 'scoped memory for tpu_custom_call.1']
    #allocation5 [shape = 'u8[1024]{0}', space=vmem, size = 0x400, scoped, tag = 'input window, operand 1, single buffered']
    #allocation6 [shape = 's32[1]{0}', space=sflag, size = 0x4, scoped, tag = 'scoped memory for tpu_custom_call.1']
    #allocation7 [shape = 'u8[65536]{0}', space=vmem, size = 0x10000, scoped, tag = 'input window, operand 4, single buffered']
    #allocation8 [shape = 'u8[131072]{0}', space=vmem, size = 0x20000, scoped, tag = 'output window, operand 0']
    %11 = vsyncpa [#allocation3], 0
    %s12 = scalar_lea.sflag [#allocation3], 1
    %13 = vsyncpa %s12, 0
    %14 = vsyncpa [#allocation6], 0
    %15 = vsyncpa [#allocation4], 0
    %s16 = scalar_lea.sflag [#allocation4], 1
    %17 = vsyncpa %s16, 0
    loop: start=0, step=1, limit=4
    $region2: #{tpu_custom_call.1} parent=1 // loop_pre_header
      _
    $region3: #{tpu_custom_call.1} parent=1 // loop_header
      %s19 = sphi 0, %s23
      %p20 = scmp.ge.s32.totalorder %s19, 4
      %s29 = sphi 0, %s31
      %s32 = sphi 0, %s29
      %s33 = sphi 0, %s32
      %s49 = sphi 0, %s33
      %s53 = sphi 0, %s53
      %s55 = sphi 0, %s53
      %s56 = sphi 0, %s55
      %s70 = sphi 0, %s56
      %s74 = sphi 0, %s74
      %s76 = sphi 0, %s74
      %s77 = sphi 0, %s76
      %s91 = sphi 0, %s77
      %s95 = sphi 0, %s95
      %s97 = sphi 0, %s95
      %s98 = sphi 0, %s97
      %s112 = sphi 0, %s98
      %s116 = sphi 0, %s116
      %s118 = sphi 0, %s116
      %s119 = sphi 0, %s118
      %s133 = sphi 0, %s119
      %s137 = sphi 0, %s137
      %s139 = sphi 0, %s137
      %s140 = sphi 0, %s139
      %s154 = sphi 0, %s140
      %s160 = sphi 0, %s162
      %s163 = sphi 0, %s160
      %s164 = sphi 0, %s163
      %s180 = sphi 0, %s164
    $region4: #{tpu_custom_call.1} parent=1 // loop_header_branch
      %22 = sbr.rel (%p20) target = $region8
    $region5: #{tpu_custom_call.1} parent=1 // loop_body
      %s24 = ssub.s32 %s19, 1
      %s25 = ssub.s32 %s19, 2
      %s26 = sadd.s32 %s19, 1
      %s27 = ssub.s32 %s19, %s26
      %p28 = scmp.eq.s32.totalorder %s27, 0
      %s30 = sadd.s32 %s29, 1
      %s31 = scalar_select %p28, %s29, %s30
      %p34 = pneg %p28
      %p35 = scmp.eq.s32.totalorder %s19, 1
      %p36 = por %p34, %p35
      %p37 = scmp.ne.s32.totalorder %s29, %s32
      %p38 = scmp.eq.s32.totalorder %s19, 0
      %p39 = por %p37, %p38
      %p40 = scmp.ne.s32.totalorder %s29, %s32
      %p41 = scmp.eq.s32.totalorder %s24, 1
      %p42 = por %p40, %p41
      %p43 = scmp.ne.s32.totalorder %s32, %s33
      %p44 = scmp.eq.s32.totalorder %s24, 0
      %p45 = por %p43, %p44
      %p46 = scmp.ne.s32.totalorder %s32, %s33
      %p47 = scmp.eq.s32.totalorder %s25, 1
      %p48 = por %p46, %p47
      %p50 = scmp.ne.s32.totalorder %s33, %s49
      %p51 = scmp.eq.s32.totalorder %s25, 0
      %p52 = por %p50, %p51
      %s54 = sadd.s32 %s53, 1
      %p57 = scmp.eq.s32.totalorder %s19, 1
      %p58 = scmp.ne.s32.totalorder %s53, %s55
      %p59 = scmp.eq.s32.totalorder %s19, 0
      %p60 = por %p58, %p59
      %p61 = scmp.ne.s32.totalorder %s53, %s55
      %p62 = scmp.eq.s32.totalorder %s24, 1
      %p63 = por %p61, %p62
      %p64 = scmp.ne.s32.totalorder %s55, %s56
      %p65 = scmp.eq.s32.totalorder %s24, 0
      %p66 = por %p64, %p65
      %p67 = scmp.ne.s32.totalorder %s55, %s56
      %p68 = scmp.eq.s32.totalorder %s25, 1
      %p69 = por %p67, %p68
      %p71 = scmp.ne.s32.totalorder %s56, %s70
      %p72 = scmp.eq.s32.totalorder %s25, 0
      %p73 = por %p71, %p72
      %s75 = sadd.s32 %s74, 1
      %p78 = scmp.eq.s32.totalorder %s19, 1
      %p79 = scmp.ne.s32.totalorder %s74, %s76
      %p80 = scmp.eq.s32.totalorder %s19, 0
      %p81 = por %p79, %p80
      %p82 = scmp.ne.s32.totalorder %s74, %s76
      %p83 = scmp.eq.s32.totalorder %s24, 1
      %p84 = por %p82, %p83
      %p85 = scmp.ne.s32.totalorder %s76, %s77
      %p86 = scmp.eq.s32.totalorder %s24, 0
      %p87 = por %p85, %p86
      %p88 = scmp.ne.s32.totalorder %s76, %s77
      %p89 = scmp.eq.s32.totalorder %s25, 1
      %p90 = por %p88, %p89
      %p92 = scmp.ne.s32.totalorder %s77, %s91
      %p93 = scmp.eq.s32.totalorder %s25, 0
      %p94 = por %p92, %p93
      %s96 = sadd.s32 %s95, 1
      %p99 = scmp.eq.s32.totalorder %s19, 1
      %p100 = scmp.ne.s32.totalorder %s95, %s97
      %p101 = scmp.eq.s32.totalorder %s19, 0
      %p102 = por %p100, %p101
      %p103 = scmp.ne.s32.totalorder %s95, %s97
      %p104 = scmp.eq.s32.totalorder %s24, 1
      %p105 = por %p103, %p104
      %p106 = scmp.ne.s32.totalorder %s97, %s98
      %p107 = scmp.eq.s32.totalorder %s24, 0
      %p108 = por %p106, %p107
      %p109 = scmp.ne.s32.totalorder %s97, %s98
      %p110 = scmp.eq.s32.totalorder %s25, 1
      %p111 = por %p109, %p110
      %p113 = scmp.ne.s32.totalorder %s98, %s112
      %p114 = scmp.eq.s32.totalorder %s25, 0
      %p115 = por %p113, %p114
      %s117 = sadd.s32 %s116, 1
      %p120 = scmp.eq.s32.totalorder %s19, 1
      %p121 = scmp.ne.s32.totalorder %s116, %s118
      %p122 = scmp.eq.s32.totalorder %s19, 0
      %p123 = por %p121, %p122
      %p124 = scmp.ne.s32.totalorder %s116, %s118
      %p125 = scmp.eq.s32.totalorder %s24, 1
      %p126 = por %p124, %p125
      %p127 = scmp.ne.s32.totalorder %s118, %s119
      %p128 = scmp.eq.s32.totalorder %s24, 0
      %p129 = por %p127, %p128
      %p130 = scmp.ne.s32.totalorder %s118, %s119
      %p131 = scmp.eq.s32.totalorder %s25, 1
      %p132 = por %p130, %p131
      %p134 = scmp.ne.s32.totalorder %s119, %s133
      %p135 = scmp.eq.s32.totalorder %s25, 0
      %p136 = por %p134, %p135
      %s138 = sadd.s32 %s137, 1
      %p141 = scmp.eq.s32.totalorder %s19, 1
      %p142 = scmp.ne.s32.totalorder %s137, %s139
      %p143 = scmp.eq.s32.totalorder %s19, 0
      %p144 = por %p142, %p143
      %p145 = scmp.ne.s32.totalorder %s137, %s139
      %p146 = scmp.eq.s32.totalorder %s24, 1
      %p147 = por %p145, %p146
      %p148 = scmp.ne.s32.totalorder %s139, %s140
      %p149 = scmp.eq.s32.totalorder %s24, 0
      %p150 = por %p148, %p149
      %p151 = scmp.ne.s32.totalorder %s139, %s140
      %p152 = scmp.eq.s32.totalorder %s25, 1
      %p153 = por %p151, %p152
      %p155 = scmp.ne.s32.totalorder %s140, %s154
      %p156 = scmp.eq.s32.totalorder %s25, 0
      %p157 = por %p155, %p156
      %s158 = ssub.s32 %s19, %s26
      %p159 = scmp.eq.s32.totalorder %s158, 0
      %s161 = sadd.s32 %s160, 1
      %s162 = scalar_select %p159, %s160, %s161
      %p165 = pneg %p159
      %p166 = scmp.eq.s32.totalorder %s19, 1
      %p167 = por %p165, %p166
      %p168 = scmp.ne.s32.totalorder %s160, %s163
      %p169 = scmp.eq.s32.totalorder %s19, 0
      %p170 = por %p168, %p169
      %p171 = scmp.ne.s32.totalorder %s160, %s163
      %p172 = scmp.eq.s32.totalorder %s24, 1
      %p173 = por %p171, %p172
      %p174 = scmp.ne.s32.totalorder %s163, %s164
      %p175 = scmp.eq.s32.totalorder %s24, 0
      %p176 = por %p174, %p175
      %p177 = scmp.ne.s32.totalorder %s163, %s164
      %p178 = scmp.eq.s32.totalorder %s25, 1
      %p179 = por %p177, %p178
      %p181 = scmp.ne.s32.totalorder %s164, %s180
      %p182 = scmp.eq.s32.totalorder %s25, 0
      %p183 = por %p181, %p182
      %p184 = scmp.le.s32.totalorder 1, %s19
      %p185 = scmp.lt.s32.totalorder %s19, 3
      %p186 = pnand %p184, %p185
      %p187 = pneg %p186
      // Predicated region
      $region9: #{tpu_custom_call.1} parent=5 // pred_check
        _
      $region10: #{tpu_custom_call.1} parent=5 // pred_check_branch
        %189 = sbr.rel (%p186) target = $region12
      $region11: #{tpu_custom_call.1} parent=5 // pred_region
        %s190 = ssub.s32 %s19, 1
        // Predicated region
        $region13: #{tpu_custom_call.1} parent=11 // pred_check
          %p191 = pneg %p66
        $region14: #{tpu_custom_call.1} parent=11 // pred_check_branch
          %193 = sbr.rel (%p191) target = $region16
        $region15: #{tpu_custom_call.1} parent=11 // pred_region
          %s195 = ssub.s32 32, 32
          %196 = vsyncadd [#allocation6], %s195
          %s198 = sshll.u32 [#allocation5], 4
          %s199 = int_to_ptr.vmem [resolvable:$true] %s198
          %201 = dma.hbm_to_vmem [thread:$0]  %s1, 32, %s199, [#allocation6]
        $region16: #{tpu_custom_call.1} parent=11 // pred_fallthru
          _
        // Predicated region
        $region17: #{tpu_custom_call.1} parent=11 // pred_check
          %p202 = pneg %p87
        $region18: #{tpu_custom_call.1} parent=11 // pred_check_branch
          %204 = sbr.rel (%p202) target = $region20
        $region19: #{tpu_custom_call.1} parent=11 // pred_region
          _
        $region20: #{tpu_custom_call.1} parent=11 // pred_fallthru
          _
        // Predicated region
        $region21: #{tpu_custom_call.1} parent=11 // pred_check
          %p205 = pneg %p108
        $region22: #{tpu_custom_call.1} parent=11 // pred_check_branch
          %207 = sbr.rel (%p205) target = $region24
        $region23: #{tpu_custom_call.1} parent=11 // pred_region
          _
        $region24: #{tpu_custom_call.1} parent=11 // pred_fallthru
          _
        // Predicated region
        $region25: #{tpu_custom_call.1} parent=11 // pred_check
          %p208 = pneg %p129
        $region26: #{tpu_custom_call.1} parent=11 // pred_check_branch
          %210 = sbr.rel (%p208) target = $region28
        $region27: #{tpu_custom_call.1} parent=11 // pred_region
          %s212 = ssub.s32 2048, 2048
          %213 = vsyncadd [#allocation6], %s212
          %s214 = sshll.u32 [#allocation7], 4
          %s215 = int_to_ptr.vmem [resolvable:$true] %s214
          %220 = dma.hbm_to_vmem [thread:$0]  %s4, 2048, %s215, [#allocation6], 128, 128, 8
        $region28: #{tpu_custom_call.1} parent=11 // pred_fallthru
          _
        // Predicated region
        $region29: #{tpu_custom_call.1} parent=11 // pred_check
          %p221 = pneg %p150
        $region30: #{tpu_custom_call.1} parent=11 // pred_check_branch
          %223 = sbr.rel (%p221) target = $region32
        $region31: #{tpu_custom_call.1} parent=11 // pred_region
          _
        $region32: #{tpu_custom_call.1} parent=11 // pred_fallthru
          _
      $region12: #{tpu_custom_call.1} parent=5 // pred_fallthru
        _
      %p224 = scmp.lt.s32.totalorder %s19, 2
      // Predicated region
      $region33: #{tpu_custom_call.1} parent=5 // pred_check
        %p225 = pneg %p224
      $region34: #{tpu_custom_call.1} parent=5 // pred_check_branch
        %227 = sbr.rel (%p225) target = $region36
      $region35: #{tpu_custom_call.1} parent=5 // pred_region
        // Predicated region
        $region37: #{tpu_custom_call.1} parent=35 // pred_check
          %p228 = pneg %p39
        $region38: #{tpu_custom_call.1} parent=35 // pred_check_branch
          %230 = sbr.rel (%p228) target = $region40
        $region39: #{tpu_custom_call.1} parent=35 // pred_region
          %s231 = sand.u32 %s29, 1
          %s232 = scalar_lea.sflag [#allocation3], %s231
          %s233 = sand.u32 %s29, 1
          %s234 = smul.addr %s233, 128
          %s235 = scalar_lea.vmem [#allocation2], %s234
          %s236 = smul.u32 16, %s19
          %s238 = ssub.s32 2048, 2048
          %239 = vsyncadd %s232, %s238
          %s240 = smul.addr %s236, 128
          %s241 = scalar_lea.hbm %s0, %s240
          %s242 = sshll.u32 %s235, 4
          %s243 = int_to_ptr.vmem [resolvable:$true] %s242
          %248 = dma.hbm_to_vmem [thread:$0]  %s241, 2048, %s243, %s232, 128, 128, 8
        $region40: #{tpu_custom_call.1} parent=35 // pred_fallthru
          _
      $region36: #{tpu_custom_call.1} parent=5 // pred_fallthru
        _
      %p249 = scmp.le.s32.totalorder 1, %s19
      %p250 = scmp.lt.s32.totalorder %s19, 3
      %p251 = pnand %p249, %p250
      %p252 = pneg %p251
      // Predicated region
      $region41: #{tpu_custom_call.1} parent=5 // pred_check
        _
      $region42: #{tpu_custom_call.1} parent=5 // pred_check_branch
        %254 = sbr.rel (%p251) target = $region44
      $region43: #{tpu_custom_call.1} parent=5 // pred_region
        %s255 = ssub.s32 %s19, 1
        %s256 = sand.u32 %s32, 1
        %s257 = scalar_lea.sflag [#allocation3], %s256
        %s258 = sand.u32 %s32, 1
        %s259 = smul.addr %s258, 128
        %s260 = scalar_lea.vmem [#allocation2], %s259
        // Predicated region
        $region45: #{tpu_custom_call.1} parent=43 // pred_check
          %p261 = pneg %p45
        $region46: #{tpu_custom_call.1} parent=43 // pred_check_branch
          %263 = sbr.rel (%p261) target = $region48
        $region47: #{tpu_custom_call.1} parent=43 // pred_region
          %264 = dma.done %s257, 2048
        $region48: #{tpu_custom_call.1} parent=43 // pred_fallthru
          _
        // Predicated region
        $region49: #{tpu_custom_call.1} parent=43 // pred_check
          %p265 = pneg %p66
        $region50: #{tpu_custom_call.1} parent=43 // pred_check_branch
          %267 = sbr.rel (%p265) target = $region52
        $region51: #{tpu_custom_call.1} parent=43 // pred_region
          %268 = dma.done [#allocation6], 32
        $region52: #{tpu_custom_call.1} parent=43 // pred_fallthru
          _
        // Predicated region
        $region53: #{tpu_custom_call.1} parent=43 // pred_check
          %p269 = pneg %p129
        $region54: #{tpu_custom_call.1} parent=43 // pred_check_branch
          %271 = sbr.rel (%p269) target = $region56
        $region55: #{tpu_custom_call.1} parent=43 // pred_region
          %272 = dma.done [#allocation6], 2048
        $region56: #{tpu_custom_call.1} parent=43 // pred_fallthru
          _
        %s273 = sand.u32 %s32, 1
        %s274 = scalar_lea.sflag [#allocation3], %s273
        %s275 = sand.u32 %s32, 1
        %s276 = smul.addr %s275, 128
        %s277 = scalar_lea.vmem [#allocation2], %s276
        %p278 = pneg %p45
        %p279 = pneg %p42
        %p280 = pneg %p66
        %p281 = pneg %p63
        %p282 = pneg %p87
        %p283 = pneg %p84
        %p284 = pneg %p108
        %p285 = pneg %p105
        %p286 = pneg %p129
        %p287 = pneg %p126
        %p288 = pneg %p150
        %p289 = pneg %p147
        %p290 = pneg %p176
        %p291 = pneg %p173
        %s292 = sand.u32 %s163, 1
        %s293 = scalar_lea.sflag [#allocation4], %s292
        %s294 = sand.u32 %s163, 1
        %s295 = smul.addr %s294, 128
        %s296 = scalar_lea.vmem [#allocation8], %s295
        %s297 = smul.u32 16, %s24
        %s298 = smul.u32 16, %s24
        %v299 = vld [vmem:[%s260] sm:$0xff]
        %v300 = vld [vmem:[%s260 + $0x8] sm:$0xff]
        %v301 = vld [vmem:[%s260 + $0x10] sm:$0xff]
        %v302 = vld [vmem:[%s260 + $0x18] sm:$0xff]
        %v303 = vld [vmem:[%s260 + $0x20] sm:$0xff]
        %v304 = vld [vmem:[%s260 + $0x28] sm:$0xff]
        %v305 = vld [vmem:[%s260 + $0x30] sm:$0xff]
        %v306 = vld [vmem:[%s260 + $0x38] sm:$0xff]
        %v307 = vld [vmem:[%s260 + $0x40] sm:$0xff]
        %v308 = vld [vmem:[%s260 + $0x48] sm:$0xff]
        %v309 = vld [vmem:[%s260 + $0x50] sm:$0xff]
        %v310 = vld [vmem:[%s260 + $0x58] sm:$0xff]
        %v311 = vld [vmem:[%s260 + $0x60] sm:$0xff]
        %v312 = vld [vmem:[%s260 + $0x68] sm:$0xff]
        %v313 = vld [vmem:[%s260 + $0x70] sm:$0xff]
        %v314 = vld [vmem:[%s260 + $0x78] sm:$0xff]
        %v315 = vld [vmem:[#allocation5] sm:$0x3]
        %v316 = vld [vmem:[%s2] sm:$0x3]
        %v317 = vld [vmem:[%s3] sm:$0x3]
        %318 = vrot.lane.b32.xlu0 %v299, 64
        %v319 = vpop.permute.xlu0 %318
        %320 = vrot.lane.b32.xlu0 %v300, 64
        %v321 = vpop.permute.xlu0 %320
        %322 = vrot.lane.b32.xlu0 %v301, 64
        %v323 = vpop.permute.xlu0 %322
        %324 = vrot.lane.b32.xlu0 %v302, 64
        %v325 = vpop.permute.xlu0 %324
        %326 = vrot.lane.b32.xlu0 %v303, 64
        %v327 = vpop.permute.xlu0 %326
        %328 = vrot.lane.b32.xlu0 %v304, 64
        %v329 = vpop.permute.xlu0 %328
        %330 = vrot.lane.b32.xlu0 %v305, 64
        %v331 = vpop.permute.xlu0 %330
        %332 = vrot.lane.b32.xlu0 %v306, 64
        %v333 = vpop.permute.xlu0 %332
        %334 = vrot.lane.b32.xlu0 %v307, 64
        %v335 = vpop.permute.xlu0 %334
        %336 = vrot.lane.b32.xlu0 %v308, 64
        %v337 = vpop.permute.xlu0 %336
        %338 = vrot.lane.b32.xlu0 %v309, 64
        %v339 = vpop.permute.xlu0 %338
        %340 = vrot.lane.b32.xlu0 %v310, 64
        %v341 = vpop.permute.xlu0 %340
        %342 = vrot.lane.b32.xlu0 %v311, 64
        %v343 = vpop.permute.xlu0 %342
        %344 = vrot.lane.b32.xlu0 %v312, 64
        %v345 = vpop.permute.xlu0 %344
        %346 = vrot.lane.b32.xlu0 %v313, 64
        %v347 = vpop.permute.xlu0 %346
        %348 = vrot.lane.b32.xlu0 %v314, 64
        %v349 = vpop.permute.xlu0 %348
        %v350 = vlaneseq
        %v351 = vshrl.u32 %v350, 7
        %v352 = vsub.s32 0, %v351
        %v353 = vrot.slane %v315, %v352
        %v354 = vmul.f32 %v353, %v299
        %v355 = vmul.f32 %v353, %v300
        %v356 = vmul.f32 %v353, %v301
        %v357 = vmul.f32 %v353, %v302
        %v358 = vmul.f32 %v353, %v303
        %v359 = vmul.f32 %v353, %v304
        %v360 = vmul.f32 %v353, %v305
        %v361 = vmul.f32 %v353, %v306
        %v362 = vmul.f32 %v353, %v307
        %v363 = vmul.f32 %v353, %v308
        %v364 = vmul.f32 %v353, %v309
        %v365 = vmul.f32 %v353, %v310
        %v366 = vmul.f32 %v353, %v311
        %v367 = vmul.f32 %v353, %v312
        %v368 = vmul.f32 %v353, %v313
        %v369 = vmul.f32 %v353, %v314
        %v370 = vlaneseq
        %v371 = vshrl.u32 %v370, 7
        %v372 = vsub.s32 0, %v371
        %v373 = vrot.slane %v316, %v372
        %v374 = vmul.f32 %v373, %v319
        %v375 = vmul.f32 %v373, %v321
        %v376 = vmul.f32 %v373, %v323
        %v377 = vmul.f32 %v373, %v325
        %v378 = vmul.f32 %v373, %v327
        %v379 = vmul.f32 %v373, %v329
        %v380 = vmul.f32 %v373, %v331
        %v381 = vmul.f32 %v373, %v333
        %v382 = vmul.f32 %v373, %v335
        %v383 = vmul.f32 %v373, %v337
        %v384 = vmul.f32 %v373, %v339
        %v385 = vmul.f32 %v373, %v341
        %v386 = vmul.f32 %v373, %v343
        %v387 = vmul.f32 %v373, %v345
        %v388 = vmul.f32 %v373, %v347
        %v389 = vmul.f32 %v373, %v349
        %v390 = vadd.f32 %v354, %v374
        %v391 = vadd.f32 %v355, %v375
        %v392 = vadd.f32 %v356, %v376
        %v393 = vadd.f32 %v357, %v377
        %v394 = vadd.f32 %v358, %v378
        %v395 = vadd.f32 %v359, %v379
        %v396 = vadd.f32 %v360, %v380
        %v397 = vadd.f32 %v361, %v381
        %v398 = vadd.f32 %v362, %v382
        %v399 = vadd.f32 %v363, %v383
        %v400 = vadd.f32 %v364, %v384
        %v401 = vadd.f32 %v365, %v385
        %v402 = vadd.f32 %v366, %v386
        %v403 = vadd.f32 %v367, %v387
        %v404 = vadd.f32 %v368, %v388
        %v405 = vadd.f32 %v369, %v389
        %v406 = vlaneseq
        %v407 = vshrl.u32 %v406, 7
        %v408 = vsub.s32 0, %v407
        %v409 = vrot.slane %v317, %v408
        %v410 = vadd.f32 %v390, %v409
        %v411 = vadd.f32 %v391, %v409
        %v412 = vadd.f32 %v392, %v409
        %v413 = vadd.f32 %v393, %v409
        %v414 = vadd.f32 %v394, %v409
        %v415 = vadd.f32 %v395, %v409
        %v416 = vadd.f32 %v396, %v409
        %v417 = vadd.f32 %v397, %v409
        %v418 = vadd.f32 %v398, %v409
        %v419 = vadd.f32 %v399, %v409
        %v420 = vadd.f32 %v400, %v409
        %v421 = vadd.f32 %v401, %v409
        %v422 = vadd.f32 %v402, %v409
        %v423 = vadd.f32 %v403, %v409
        %v424 = vadd.f32 %v404, %v409
        %v425 = vadd.f32 %v405, %v409
        %v426 = vmax.f32 %v410, 0.0
        %v427 = vmax.f32 %v411, 0.0
        %v428 = vmax.f32 %v412, 0.0
        %v429 = vmax.f32 %v413, 0.0
        %v430 = vmax.f32 %v414, 0.0
        %v431 = vmax.f32 %v415, 0.0
        %v432 = vmax.f32 %v416, 0.0
        %v433 = vmax.f32 %v417, 0.0
        %v434 = vmax.f32 %v418, 0.0
        %v435 = vmax.f32 %v419, 0.0
        %v436 = vmax.f32 %v420, 0.0
        %v437 = vmax.f32 %v421, 0.0
        %v438 = vmax.f32 %v422, 0.0
        %v439 = vmax.f32 %v423, 0.0
        %v440 = vmax.f32 %v424, 0.0
        %v441 = vmax.f32 %v425, 0.0
        %442 = vrot.lane.b32.xlu0 %v426, 64
        %v443 = vpop.permute.xlu0 %442
        %444 = vrot.lane.b32.xlu0 %v427, 64
        %v445 = vpop.permute.xlu0 %444
        %446 = vrot.lane.b32.xlu0 %v428, 64
        %v447 = vpop.permute.xlu0 %446
        %448 = vrot.lane.b32.xlu0 %v429, 64
        %v449 = vpop.permute.xlu0 %448
        %450 = vrot.lane.b32.xlu0 %v430, 64
        %v451 = vpop.permute.xlu0 %450
        %452 = vrot.lane.b32.xlu0 %v431, 64
        %v453 = vpop.permute.xlu0 %452
        %454 = vrot.lane.b32.xlu0 %v432, 64
        %v455 = vpop.permute.xlu0 %454
        %456 = vrot.lane.b32.xlu0 %v433, 64
        %v457 = vpop.permute.xlu0 %456
        %458 = vrot.lane.b32.xlu0 %v434, 64
        %v459 = vpop.permute.xlu0 %458
        %460 = vrot.lane.b32.xlu0 %v435, 64
        %v461 = vpop.permute.xlu0 %460
        %462 = vrot.lane.b32.xlu0 %v436, 64
        %v463 = vpop.permute.xlu0 %462
        %464 = vrot.lane.b32.xlu0 %v437, 64
        %v465 = vpop.permute.xlu0 %464
        %466 = vrot.lane.b32.xlu0 %v438, 64
        %v467 = vpop.permute.xlu0 %466
        %468 = vrot.lane.b32.xlu0 %v439, 64
        %v469 = vpop.permute.xlu0 %468
        %470 = vrot.lane.b32.xlu0 %v440, 64
        %v471 = vpop.permute.xlu0 %470
        %472 = vrot.lane.b32.xlu0 %v441, 64
        %v473 = vpop.permute.xlu0 %472
        %v474 = vlaneseq
        %v475 = vshrl.u32 %v474, 7
        %v476 = vsub.s32 1, %v475
        %v477 = vrot.slane %v315, %v476
        %v478 = vmul.f32 %v477, %v426
        %v479 = vmul.f32 %v477, %v427
        %v480 = vmul.f32 %v477, %v428
        %v481 = vmul.f32 %v477, %v429
        %v482 = vmul.f32 %v477, %v430
        %v483 = vmul.f32 %v477, %v431
        %v484 = vmul.f32 %v477, %v432
        %v485 = vmul.f32 %v477, %v433
        %v486 = vmul.f32 %v477, %v434
        %v487 = vmul.f32 %v477, %v435
        %v488 = vmul.f32 %v477, %v436
        %v489 = vmul.f32 %v477, %v437
        %v490 = vmul.f32 %v477, %v438
        %v491 = vmul.f32 %v477, %v439
        %v492 = vmul.f32 %v477, %v440
        %v493 = vmul.f32 %v477, %v441
        %v494 = vlaneseq
        %v495 = vshrl.u32 %v494, 7
        %v496 = vsub.s32 1, %v495
        %v497 = vrot.slane %v316, %v496
        %v498 = vmul.f32 %v497, %v443
        %v499 = vmul.f32 %v497, %v445
        %v500 = vmul.f32 %v497, %v447
        %v501 = vmul.f32 %v497, %v449
        %v502 = vmul.f32 %v497, %v451
        %v503 = vmul.f32 %v497, %v453
        %v504 = vmul.f32 %v497, %v455
        %v505 = vmul.f32 %v497, %v457
        %v506 = vmul.f32 %v497, %v459
        %v507 = vmul.f32 %v497, %v461
        %v508 = vmul.f32 %v497, %v463
        %v509 = vmul.f32 %v497, %v465
        %v510 = vmul.f32 %v497, %v467
        %v511 = vmul.f32 %v497, %v469
        %v512 = vmul.f32 %v497, %v471
        %v513 = vmul.f32 %v497, %v473
        %v514 = vadd.f32 %v478, %v498
        %v515 = vadd.f32 %v479, %v499
        %v516 = vadd.f32 %v480, %v500
        %v517 = vadd.f32 %v481, %v501
        %v518 = vadd.f32 %v482, %v502
        %v519 = vadd.f32 %v483, %v503
        %v520 = vadd.f32 %v484, %v504
        %v521 = vadd.f32 %v485, %v505
        %v522 = vadd.f32 %v486, %v506
        %v523 = vadd.f32 %v487, %v507
        %v524 = vadd.f32 %v488, %v508
        %v525 = vadd.f32 %v489, %v509
        %v526 = vadd.f32 %v490, %v510
        %v527 = vadd.f32 %v491, %v511
        %v528 = vadd.f32 %v492, %v512
        %v529 = vadd.f32 %v493, %v513
        %v530 = vlaneseq
        %v531 = vshrl.u32 %v530, 7
        %v532 = vsub.s32 1, %v531
        %v533 = vrot.slane %v317, %v532
        %v534 = vadd.f32 %v514, %v533
        %v535 = vadd.f32 %v515, %v533
        %v536 = vadd.f32 %v516, %v533
        %v537 = vadd.f32 %v517, %v533
        %v538 = vadd.f32 %v518, %v533
        %v539 = vadd.f32 %v519, %v533
        %v540 = vadd.f32 %v520, %v533
        %v541 = vadd.f32 %v521, %v533
        %v542 = vadd.f32 %v522, %v533
        %v543 = vadd.f32 %v523, %v533
        %v544 = vadd.f32 %v524, %v533
        %v545 = vadd.f32 %v525, %v533
        %v546 = vadd.f32 %v526, %v533
        %v547 = vadd.f32 %v527, %v533
        %v548 = vadd.f32 %v528, %v533
        %v549 = vadd.f32 %v529, %v533
        %v550 = vmax.f32 %v534, 0.0
        %v551 = vmax.f32 %v535, 0.0
        %v552 = vmax.f32 %v536, 0.0
        %v553 = vmax.f32 %v537, 0.0
        %v554 = vmax.f32 %v538, 0.0
        %v555 = vmax.f32 %v539, 0.0
        %v556 = vmax.f32 %v540, 0.0
        %v557 = vmax.f32 %v541, 0.0
        %v558 = vmax.f32 %v542, 0.0
        %v559 = vmax.f32 %v543, 0.0
        %v560 = vmax.f32 %v544, 0.0
        %v561 = vmax.f32 %v545, 0.0
        %v562 = vmax.f32 %v546, 0.0
        %v563 = vmax.f32 %v547, 0.0
        %v564 = vmax.f32 %v548, 0.0
        %v565 = vmax.f32 %v549, 0.0
        %v566 = vld [vmem:[#allocation7] sm:$0xff]
        %v567 = vld [vmem:[#allocation7 + $0x8] sm:$0xff]
        %v568 = vld [vmem:[#allocation7 + $0x10] sm:$0xff]
        %v569 = vld [vmem:[#allocation7 + $0x18] sm:$0xff]
        %v570 = vld [vmem:[#allocation7 + $0x20] sm:$0xff]
        %v571 = vld [vmem:[#allocation7 + $0x28] sm:$0xff]
        %v572 = vld [vmem:[#allocation7 + $0x30] sm:$0xff]
        %v573 = vld [vmem:[#allocation7 + $0x38] sm:$0xff]
        %v574 = vld [vmem:[#allocation7 + $0x40] sm:$0xff]
        %v575 = vld [vmem:[#allocation7 + $0x48] sm:$0xff]
        %v576 = vld [vmem:[#allocation7 + $0x50] sm:$0xff]
        %v577 = vld [vmem:[#allocation7 + $0x58] sm:$0xff]
        %v578 = vld [vmem:[#allocation7 + $0x60] sm:$0xff]
        %v579 = vld [vmem:[#allocation7 + $0x68] sm:$0xff]
        %v580 = vld [vmem:[#allocation7 + $0x70] sm:$0xff]
        %v581 = vld [vmem:[#allocation7 + $0x78] sm:$0xff]
        %v582 = vld [vmem:[%s5] sm:$0x1]
        %v584 = vlaneseq
        %v585 = vshrl.u32 %v584, 7
        %v586 = vsub.s32 0, %v585
        %v587 = vrot.slane %v582, %v586
        %589 = vmatprep.subr.mxu0 0.0
        %590 = vmatpush1.msra.mxu0 %v581
        %591 = vmatprep.subr.mxu0 0.0
        %592 = vmatpush1.msra.mxu0 %v580
        %593 = vmatprep.subr.mxu0 0.0
        %594 = vmatpush1.msra.mxu0 %v579
        %595 = vmatprep.subr.mxu0 0.0
        %596 = vmatpush1.msra.mxu0 %v578
        %597 = vmatprep.subr.mxu0 0.0
        %598 = vmatpush1.msra.mxu0 %v577
        %599 = vmatprep.subr.mxu0 0.0
        %600 = vmatpush1.msra.mxu0 %v576
        %601 = vmatprep.subr.mxu0 0.0
        %602 = vmatpush1.msra.mxu0 %v575
        %603 = vmatprep.subr.mxu0 0.0
        %604 = vmatpush1.msra.mxu0 %v574
        %605 = vmatprep.subr.mxu0 0.0
        %606 = vmatpush1.msra.mxu0 %v573
        %607 = vmatprep.subr.mxu0 0.0
        %608 = vmatpush1.msra.mxu0 %v572
        %609 = vmatprep.subr.mxu0 0.0
        %610 = vmatpush1.msra.mxu0 %v571
        %611 = vmatprep.subr.mxu0 0.0
        %612 = vmatpush1.msra.mxu0 %v570
        %613 = vmatprep.subr.mxu0 0.0
        %614 = vmatpush1.msra.mxu0 %v569
        %615 = vmatprep.subr.mxu0 0.0
        %616 = vmatpush1.msra.mxu0 %v568
        %617 = vmatprep.subr.mxu0 0.0
        %618 = vmatpush1.msra.mxu0 %v567
        %619 = vmatprep.subr.mxu0 0.0
        %620 = vmatpush1.msra.mxu0 %v566
        %621 = vmatprep.subr.mxu0 0.0
        %622 = vmatpush2.msra.mxu0 0.0
        %623 = vmatprep.subr.mxu0 0.0
        %624 = vmatpush2.msra.mxu0 0.0
        %625 = vmatprep.subr.mxu0 0.0
        %626 = vmatpush2.msra.mxu0 0.0
        %627 = vmatprep.subr.mxu0 0.0
        %628 = vmatpush2.msra.mxu0 0.0
        %629 = vmatprep.subr.mxu0 0.0
        %630 = vmatpush2.msra.mxu0 0.0
        %631 = vmatprep.subr.mxu0 0.0
        %632 = vmatpush2.msra.mxu0 0.0
        %633 = vmatprep.subr.mxu0 0.0
        %634 = vmatpush2.msra.mxu0 0.0
        %635 = vmatprep.subr.mxu0 0.0
        %636 = vmatpush2.msra.mxu0 0.0
        %637 = vmatprep.subr.mxu0 0.0
        %638 = vmatpush2.msra.mxu0 0.0
        %639 = vmatprep.subr.mxu0 0.0
        %640 = vmatpush2.msra.mxu0 0.0
        %641 = vmatprep.subr.mxu0 0.0
        %642 = vmatpush2.msra.mxu0 0.0
        %643 = vmatprep.subr.mxu0 0.0
        %644 = vmatpush2.msra.mxu0 0.0
        %645 = vmatprep.subr.mxu0 0.0
        %646 = vmatpush2.msra.mxu0 0.0
        %647 = vmatprep.subr.mxu0 0.0
        %648 = vmatpush2.msra.mxu0 0.0
        %649 = vmatprep.subr.mxu0 0.0
        %650 = vmatpush2.msra.mxu0 0.0
        %651 = vmatprep.subr.mxu0 0.0
        %652 = vmatpush2.msra.mxu0 0.0
        %653 = vmatprep.mubr.f32.mxu0 0.0
        %654 = vmatmul.mubr.f32.gmra.mxu0 %v550
        %v655 = vpop.f32.mrf.mxu0
        %v656 = vadd.f32 %v587, %v655
        %v657 = vpop.f32.mrf.mxu0
        %658 = vmatprep.mubr.f32.mxu0 0.0
        %659 = vmatmul.mubr.f32.gmra.mxu0 %v551
        %v660 = vpop.f32.mrf.mxu0
        %v661 = vadd.f32 %v587, %v660
        %v662 = vpop.f32.mrf.mxu0
        %663 = vmatprep.mubr.f32.mxu0 0.0
        %664 = vmatmul.mubr.f32.gmra.mxu0 %v552
        %v665 = vpop.f32.mrf.mxu0
        %v666 = vadd.f32 %v587, %v665
        %v667 = vpop.f32.mrf.mxu0
        %668 = vmatprep.mubr.f32.mxu0 0.0
        %669 = vmatmul.mubr.f32.gmra.mxu0 %v553
        %v670 = vpop.f32.mrf.mxu0
        %v671 = vadd.f32 %v587, %v670
        %v672 = vpop.f32.mrf.mxu0
        %673 = vmatprep.mubr.f32.mxu0 0.0
        %674 = vmatmul.mubr.f32.gmra.mxu0 %v554
        %v675 = vpop.f32.mrf.mxu0
        %v676 = vadd.f32 %v587, %v675
        %v677 = vpop.f32.mrf.mxu0
        %678 = vmatprep.mubr.f32.mxu0 0.0
        %679 = vmatmul.mubr.f32.gmra.mxu0 %v555
        %v680 = vpop.f32.mrf.mxu0
        %v681 = vadd.f32 %v587, %v680
        %v682 = vpop.f32.mrf.mxu0
        %683 = vmatprep.mubr.f32.mxu0 0.0
        %684 = vmatmul.mubr.f32.gmra.mxu0 %v556
        %v685 = vpop.f32.mrf.mxu0
        %v686 = vadd.f32 %v587, %v685
        %v687 = vpop.f32.mrf.mxu0
        %688 = vmatprep.mubr.f32.mxu0 0.0
        %689 = vmatmul.mubr.f32.gmra.mxu0 %v557
        %v690 = vpop.f32.mrf.mxu0
        %v691 = vadd.f32 %v587, %v690
        %v692 = vpop.f32.mrf.mxu0
        %693 = vmatprep.mubr.f32.mxu0 0.0
        %694 = vmatmul.mubr.f32.gmra.mxu0 %v558
        %v695 = vpop.f32.mrf.mxu0
        %v696 = vadd.f32 %v587, %v695
        %v697 = vpop.f32.mrf.mxu0
        %698 = vmatprep.mubr.f32.mxu0 0.0
        %699 = vmatmul.mubr.f32.gmra.mxu0 %v559
        %v700 = vpop.f32.mrf.mxu0
        %v701 = vadd.f32 %v587, %v700
        %v702 = vpop.f32.mrf.mxu0
        %703 = vmatprep.mubr.f32.mxu0 0.0
        %704 = vmatmul.mubr.f32.gmra.mxu0 %v560
        %v705 = vpop.f32.mrf.mxu0
        %v706 = vadd.f32 %v587, %v705
        %v707 = vpop.f32.mrf.mxu0
        %708 = vmatprep.mubr.f32.mxu0 0.0
        %709 = vmatmul.mubr.f32.gmra.mxu0 %v561
        %v710 = vpop.f32.mrf.mxu0
        %v711 = vadd.f32 %v587, %v710
        %v712 = vpop.f32.mrf.mxu0
        %713 = vmatprep.mubr.f32.mxu0 0.0
        %714 = vmatmul.mubr.f32.gmra.mxu0 %v562
        %v715 = vpop.f32.mrf.mxu0
        %v716 = vadd.f32 %v587, %v715
        %v717 = vpop.f32.mrf.mxu0
        %718 = vmatprep.mubr.f32.mxu0 0.0
        %719 = vmatmul.mubr.f32.gmra.mxu0 %v563
        %v720 = vpop.f32.mrf.mxu0
        %v721 = vadd.f32 %v587, %v720
        %v722 = vpop.f32.mrf.mxu0
        %723 = vmatprep.mubr.f32.mxu0 0.0
        %724 = vmatmul.mubr.f32.gmra.mxu0 %v564
        %v725 = vpop.f32.mrf.mxu0
        %v726 = vadd.f32 %v587, %v725
        %v727 = vpop.f32.mrf.mxu0
        %728 = vmatprep.mubr.f32.mxu0 0.0
        %729 = vmatmul.mubr.f32.gmra.mxu0 %v565
        %v730 = vpop.f32.mrf.mxu0
        %v731 = vadd.f32 %v587, %v730
        %v732 = vpop.f32.mrf.mxu0
        %733 = vdwg.mxu0
        %734 = vst [vmem:[%s296] sm:$0xff] %v656
        %735 = vst [vmem:[%s296 + $0x8] sm:$0xff] %v661
        %736 = vst [vmem:[%s296 + $0x10] sm:$0xff] %v666
        %737 = vst [vmem:[%s296 + $0x18] sm:$0xff] %v671
        %738 = vst [vmem:[%s296 + $0x20] sm:$0xff] %v676
        %739 = vst [vmem:[%s296 + $0x28] sm:$0xff] %v681
        %740 = vst [vmem:[%s296 + $0x30] sm:$0xff] %v686
        %741 = vst [vmem:[%s296 + $0x38] sm:$0xff] %v691
        %742 = vst [vmem:[%s296 + $0x40] sm:$0xff] %v696
        %743 = vst [vmem:[%s296 + $0x48] sm:$0xff] %v701
        %744 = vst [vmem:[%s296 + $0x50] sm:$0xff] %v706
        %745 = vst [vmem:[%s296 + $0x58] sm:$0xff] %v711
        %746 = vst [vmem:[%s296 + $0x60] sm:$0xff] %v716
        %747 = vst [vmem:[%s296 + $0x68] sm:$0xff] %v721
        %748 = vst [vmem:[%s296 + $0x70] sm:$0xff] %v726
        %749 = vst [vmem:[%s296 + $0x78] sm:$0xff] %v731
        %s750 = sand.u32 %s163, 1
        %s751 = scalar_lea.sflag [#allocation4], %s750
        %s752 = sand.u32 %s163, 1
        %s753 = smul.addr %s752, 128
        %s754 = scalar_lea.vmem [#allocation8], %s753
        // Predicated region
        $region57: #{tpu_custom_call.1} parent=43 // pred_check
          %p755 = pneg %p173
        $region58: #{tpu_custom_call.1} parent=43 // pred_check_branch
          %757 = sbr.rel (%p755) target = $region60
        $region59: #{tpu_custom_call.1} parent=43 // pred_region
          %s758 = smul.u32 16, %s24
          %s760 = ssub.s32 2048, 2048
          %761 = vsyncadd %s751, %s760
          %s762 = smul.addr %s758, 128
          %s763 = scalar_lea.hbm %s6, %s762
          %s764 = sshll.u32 %s754, 4
          %s765 = int_to_ptr.vmem [resolvable:$true] %s764
          %770 = dma.vmem_to_hbm [thread:$0]  %s765, 2048, %s763, %s751, 128, 128, 8
        $region60: #{tpu_custom_call.1} parent=43 // pred_fallthru
          _
      $region44: #{tpu_custom_call.1} parent=5 // pred_fallthru
        _
      %p771 = scmp.le.s32.totalorder 2, %s19
      // Predicated region
      $region61: #{tpu_custom_call.1} parent=5 // pred_check
        %p772 = pneg %p771
      $region62: #{tpu_custom_call.1} parent=5 // pred_check_branch
        %774 = sbr.rel (%p772) target = $region64
      $region63: #{tpu_custom_call.1} parent=5 // pred_region
        %s775 = ssub.s32 %s19, 2
        // Predicated region
        $region65: #{tpu_custom_call.1} parent=63 // pred_check
          %p776 = pneg %p179
        $region66: #{tpu_custom_call.1} parent=63 // pred_check_branch
          %778 = sbr.rel (%p776) target = $region68
        $region67: #{tpu_custom_call.1} parent=63 // pred_region
          %s779 = sand.u32 %s164, 1
          %s780 = scalar_lea.sflag [#allocation4], %s779
          %s781 = sand.u32 %s164, 1
          %s782 = smul.addr %s781, 128
          %s783 = scalar_lea.vmem [#allocation8], %s782
          %784 = dma.done %s780, 2048
        $region68: #{tpu_custom_call.1} parent=63 // pred_fallthru
          _
      $region64: #{tpu_custom_call.1} parent=5 // pred_fallthru
        _
    $region6: #{tpu_custom_call.1} parent=1 // loop_footer
      %s23 = sadd.s32 1, %s19
    $region7: #{tpu_custom_call.1} parent=1 // loop_footer_branch
      %18 = sbr.rel target = $region3
    $region8: #{tpu_custom_call.1} parent=1 // loop_exit
      _
    %785 = vsyncpa [#allocation3], 1
    %s786 = scalar_lea.sflag [#allocation3], 1
    %787 = vsyncpa %s786, 1
    %788 = vsyncpa [#allocation6], 1
    %789 = vsyncpa [#allocation4], 1
    %s790 = scalar_lea.sflag [#allocation4], 1
    %791 = vsyncpa %s790, 1

</llo_original>
